<compile_context>
chip_gen: v5e
topology: v5e:2x2
jax: 0.10.0
libtpu: 0.0.40
codegen_flags: <defaults>
</compile_context>

<pallas_src>
import functools

import jax
import jax.numpy as jnp
from jax import lax
from jax.experimental import pallas as pl
from jax.experimental.pallas import tpu as pltpu


def _round_up(x, m):
    return ((x + m - 1) // m) * m


def _rmsnorm_kernel(x_ref, w_ref, o_ref, *, eps, inv_h, input_dtype):
    # x_ref: (row_tile, Hp) input block, w_ref: (1, Hp) resident weight row
    # already cast to the output dtype in the wrapper.
    x = x_ref[...].astype(jnp.float32)                       # cast to fp32
    # sum/true_H instead of mean so zero-padded lanes (Hp > H) are exact.
    variance = jnp.sum(x * x, axis=-1, keepdims=True) * inv_h
    x = x * lax.rsqrt(variance + eps)                        # normalize
    # torch: weight * hidden_states.to(input_dtype) -> promoted output dtype,
    # with the deliberate fp32 -> input_dtype rounding before the multiply.
    o_ref[...] = w_ref[...] * x.astype(input_dtype).astype(o_ref.dtype)


def _vmem_capacity_bytes():
    try:
        cap = int(pltpu.get_tpu_info().vmem_capacity_bytes)
        if cap > 0:
            return cap
    except Exception:
        pass
    return 64 * 1024 * 1024  # conservative (v7x per-TC) fallback


def llama_rmsnorm(hidden_states, weight, eps=1e-6, *, row_tile=None,
                  vmem_budget_bytes=None):
    """hidden_states: [..., H]; weight: [H]. Returns promote(weight, x) dtype."""
    orig_shape = hidden_states.shape
    H = orig_shape[-1]
    x2d = hidden_states.reshape(-1, H)
    rows = x2d.shape[0]

    input_dtype = hidden_states.dtype
    out_dtype = jnp.promote_types(weight.dtype, input_dtype)
    in_bytes = jnp.dtype(input_dtype).itemsize
    out_bytes = jnp.dtype(out_dtype).itemsize

    # --- lane-dense hidden dim: pad to a multiple of 128 if needed ----------
    Hp = max(128, _round_up(H, 128))
    if Hp != H:
        x2d = jnp.pad(x2d, ((0, 0), (0, Hp - H)))
        w_pad = jnp.pad(weight, (0, Hp - H))
    else:
        w_pad = weight
    # Cast weight to the output dtype once here (drops the per-step VPU cast).
    w2d = w_pad.astype(out_dtype).reshape(1, Hp)
    w_bytes = out_bytes

    # --- VMEM budget (per generation) & per-row cost -------------------------
    vmem_cap = _vmem_capacity_bytes()
    if vmem_budget_bytes is None:
        # Leave headroom for compiler scratch / internal buffers.
        vmem_budget_bytes = max(32 * 1024 * 1024, vmem_cap - (24 << 20))
    vmem_budget_bytes = int(min(vmem_budget_bytes, vmem_cap - (8 << 20)))

    io_bytes_per_row = Hp * (in_bytes + out_bytes)      # double-buffered blocks
    temp_bytes_per_row = 2 * Hp * 4                     # live fp32 temporaries
    weight_bytes = 2 * Hp * w_bytes                     # double-buffered weight

    # Sublane packing multiple for the input dtype (8 fp32 / 16 bf16 / 32 int8).
    sub = max(8, 32 // in_bytes)

    # Largest tile whose (2x in + 2x out) blocks plus fp32 temps fit the budget.
    denom = 2 * io_bytes_per_row + temp_bytes_per_row
    max_rows_fit = max(sub, ((vmem_budget_bytes - weight_bytes) // denom) // sub * sub)

    if row_tile is None:
        row_cap = 1024 if vmem_budget_bytes >= (96 << 20) else 512
        row_tile = min(row_cap, max_rows_fit)
        # Ensure >= ~4 grid steps when rows are small so the "parallel" axis can
        # be sharded across both v7x TensorCores (neutral on 1-TC chips).
        step_tile = _round_up(pl.cdiv(rows, 4), sub)
        row_tile = max(sub, min(row_tile, step_tile))
    else:
        row_tile = max(sub, _round_up(int(row_tile), sub))
        row_tile = min(row_tile, max_rows_fit)          # never exceed VMEM
    row_tile = min(row_tile, _round_up(rows, sub))      # never exceed the problem

    # cdiv grid: last block may overhang; padded rows are never written and each
    # row's reduction is independent, so padding cannot corrupt results.
    grid = (pl.cdiv(rows, row_tile),)

    # Scoped-VMEM limit covering double-buffered blocks + fp32 temps + weight,
    # clamped below the physical per-TC capacity (safe on v7x's 64 MiB).
    vmem_limit = (2 * row_tile * io_bytes_per_row
                  + row_tile * temp_bytes_per_row
                  + weight_bytes + (2 << 20))
    vmem_limit = int(min(max(vmem_limit, 16 << 20), vmem_cap - (8 << 20)))

    kernel = functools.partial(
        _rmsnorm_kernel, eps=float(eps), inv_h=1.0 / float(H),
        input_dtype=input_dtype,
    )

    cost = pl.CostEstimate(
        flops=4 * rows * Hp,
        transcendentals=rows,
        bytes_accessed=rows * Hp * (in_bytes + out_bytes) + Hp * w_bytes,
    )

    out = pl.pallas_call(
        kernel,
        out_shape=jax.ShapeDtypeStruct((rows, Hp), out_dtype),
        grid_spec=pltpu.PrefetchScalarGridSpec(
            num_scalar_prefetch=0,
            grid=grid,
            in_specs=[
                pl.BlockSpec((row_tile, Hp), lambda i: (i, 0)),  # input tile
                pl.BlockSpec((1, Hp), lambda i: (0, 0)),         # resident weight
            ],
            out_specs=pl.BlockSpec((row_tile, Hp), lambda i: (i, 0)),
        ),
        compiler_params=pltpu.CompilerParams(
            dimension_semantics=("parallel",),
            vmem_limit_bytes=vmem_limit,
        ),
        cost_estimate=cost,
    )(x2d, w2d)

    if Hp != H:
        out = out[:, :H]
    return out.reshape(orig_shape)


def _reference(hidden_states, weight, eps=1e-6):
    x = hidden_states.astype(jnp.float32)
    variance = jnp.mean(x * x, axis=-1, keepdims=True)
    x = x * lax.rsqrt(variance + eps)
    return weight * x.astype(hidden_states.dtype)


if __name__ == "__main__":
    key = jax.random.PRNGKey(0)
    k1, k2 = jax.random.split(key)

    # 1) Small shape implied by the module (batch=2, seq=8, hidden=32),
    #    fp32 weight (module init: ones) with bf16 activations -> fp32 output.
    #    H=32 exercises the lane-padding path.
    batch, seq, hidden = 2, 8, 32
    x = jax.random.normal(k1, (batch, seq, hidden), dtype=jnp.float32).astype(
        jnp.bfloat16
    )
    weight = jnp.ones((hidden,), dtype=jnp.float32)
    out = jax.block_until_ready(llama_rmsnorm(x, weight, eps=1e-6))
    ref = _reference(x, weight, eps=1e-6)
    assert out.shape == ref.shape and out.dtype == ref.dtype
    assert jnp.allclose(out, ref, atol=1e-2, rtol=1e-2)

    # 2) Lane-dense hidden (multiple of 128), row count not divisible by the
    #    tile (exercises the cdiv/overhang path), bf16 weight -> bf16 output.
    b2, s2, h2 = 3, 16, 512
    x2 = jax.random.normal(k2, (b2, s2, h2), dtype=jnp.float32).astype(jnp.bfloat16)
    w2 = (1.0 + 0.01 * jnp.arange(h2, dtype=jnp.float32)).astype(jnp.bfloat16)
    out2 = jax.block_until_ready(llama_rmsnorm(x2, w2, eps=1e-6, row_tile=32))
    ref2 = _reference(x2, w2, eps=1e-6)
    assert out2.shape == ref2.shape and out2.dtype == ref2.dtype
    assert jnp.allclose(
        out2.astype(jnp.float32), ref2.astype(jnp.float32), atol=2e-2, rtol=2e-2
    )

    # 3) Auto-tiled path with many rows (exercises the auto row_tile sizer).
    x3 = jax.random.normal(k1, (4, 96, 256), dtype=jnp.float32)
    w3 = jnp.ones((256,), dtype=jnp.float32)
    out3 = jax.block_until_ready(llama_rmsnorm(x3, w3, eps=1e-6))
    ref3 = _reference(x3, w3, eps=1e-6)
    assert out3.shape == ref3.shape and out3.dtype == ref3.dtype
    assert jnp.allclose(out3, ref3, atol=1e-5, rtol=1e-5)

    print("KERNEL_OK")
</pallas_src>

<mosaic_0001>
module attributes {stable_mosaic.version = 11 : i64} {
  func.func @_rmsnorm_kernel(%arg0: i32, %arg1: memref<16x128xbf16, #tpu.memory_space<vmem>>, %arg2: memref<1x128xf32, #tpu.memory_space<vmem>>, %arg3: memref<16x128xf32, #tpu.memory_space<vmem>>) attributes {dimension_semantics = [#tpu.dimension_semantics<parallel>], iteration_bounds = array<i64: 1>, scalar_prefetch = 0 : i64, scratch_operands = 0 : i64, tpu.core_type = #tpu.core_type<tc>, window_params = [{transform_indices = @transform_0, window_bounds = array<i64: 16, 128>}, {pipeline_mode = #tpu.pipeline_mode<synchronous>, transform_indices = @transform_1, window_bounds = array<i64: 1, 128>}, {transform_indices = @transform_2, window_bounds = array<i64: 16, 128>}]} {
    %c0 = arith.constant 0 : index
    %c0_0 = arith.constant 0 : index
    %0 = vector.load %arg1[%c0, %c0_0] : memref<16x128xbf16, #tpu.memory_space<vmem>>, vector<16x128xbf16>
    %1 = arith.extf %0 : vector<16x128xbf16> to vector<16x128xf32>
    %2 = arith.mulf %1, %1 : vector<16x128xf32>
    %cst = arith.constant dense<0.000000e+00> : vector<16xf32>
    %3 = vector.multi_reduction <add>, %2, %cst [1] : vector<16x128xf32> to vector<16xf32>
    %4 = vector.shape_cast %3 : vector<16xf32> to vector<16x1xf32>
    %cst_1 = arith.constant 3.125000e-02 : f32
    %5 = vector.broadcast %cst_1 : f32 to vector<16x1xf32>
    %6 = arith.mulf %4, %5 : vector<16x1xf32>
    %cst_2 = arith.constant 9.99999997E-7 : f32
    %7 = vector.broadcast %cst_2 : f32 to vector<16x1xf32>
    %8 = arith.addf %6, %7 : vector<16x1xf32>
    %9 = math.rsqrt %8 : vector<16x1xf32>
    %10 = vector.broadcast %9 : vector<16x1xf32> to vector<16x128xf32>
    %11 = arith.mulf %1, %10 : vector<16x128xf32>
    %c0_3 = arith.constant 0 : index
    %c0_4 = arith.constant 0 : index
    %12 = vector.load %arg2[%c0_3, %c0_4] : memref<1x128xf32, #tpu.memory_space<vmem>>, vector<1x128xf32>
    %13 = arith.truncf %11 : vector<16x128xf32> to vector<16x128xbf16>
    %14 = arith.extf %13 : vector<16x128xbf16> to vector<16x128xf32>
    %15 = vector.broadcast %12 : vector<1x128xf32> to vector<16x128xf32>
    %16 = arith.mulf %15, %14 : vector<16x128xf32>
    %c0_5 = arith.constant 0 : index
    %c0_6 = arith.constant 0 : index
    %17 = vector.load %arg3[%c0_5, %c0_6] : memref<16x128xf32, #tpu.memory_space<vmem>>, vector<16x128xf32>
    tpu.vector_store %arg3[%c0_5, %c0_6], %16 {strides = array<i32>} : memref<16x128xf32, #tpu.memory_space<vmem>>, vector<16x128xf32>,
    return
  }
  func.func @transform_0(%arg0: i32) -> (i32, i32) {
    %c0_i32 = arith.constant 0 : i32
    %c0_i32_0 = arith.constant 0 : i32
    return %arg0, %c0_i32 : i32, i32
  }
  func.func @transform_1(%arg0: i32) -> (i32, i32) {
    %c0_i32 = arith.constant 0 : i32
    %c0_i32_0 = arith.constant 0 : i32
    %c0_i32_1 = arith.constant 0 : i32
    return %c0_i32, %c0_i32_0 : i32, i32
  }
  func.func @transform_2(%arg0: i32) -> (i32, i32) {
    %c0_i32 = arith.constant 0 : i32
    %c0_i32_0 = arith.constant 0 : i32
    return %arg0, %c0_i32 : i32, i32
  }
}

</mosaic_0001>

<llo_original>
// kernel: tpu_custom_call.1
$region0: #{tpu_custom_call.1}
  #allocation0 [shape = 'u32[]', space=smem, size = 0x4, offset = 0x4, fixed_abs, tag = 'smem constant byte address 0x4 - core index']
  #allocation1 [shape = 'u32[72,128]{1,0:T(1,128)}', space=vmem, size = 0x9000, scoped, tag = 'internal scratch']
  %s0 = inlined_call_operand.hbm [shape: bf16[16,128], index: 0, kind: input, shape index: {}]
  %s1 = inlined_call_operand.hbm [shape: f32[1,128], index: 1, kind: input, shape index: {}]
  %s2 = inlined_call_operand.hbm [shape: f32[16,128], index: 2, kind: output, shape index: {}]
  %s3 = sld [smem:[#allocation0]]
  $region26: #{tpu_custom_call.1} parent=0
    _
  %s5 = ssub.s32 1, %s3
  %s6 = scalar_select 0, %s5, %s3
  $region1: #{tpu_custom_call.1} parent=0
    #allocation2 [shape = 'u8[4096]{0}', space=vmem, size = 0x1000, scoped, tag = 'input window, operand 0, single buffered']
    #allocation3 [shape = 's32[1]{0}', space=sflag, size = 0x4, scoped, tag = 'scoped memory for tpu_custom_call.1']
    #allocation4 [shape = 's32[1]{0}', space=sflag, size = 0x4, scoped, tag = 'scoped memory for tpu_custom_call.1']
    #allocation5 [shape = 'u8[512]{0}', space=vmem, size = 0x400, scoped, tag = 'input window, operand 1, single buffered']
    #allocation6 [shape = 's32[1]{0}', space=sflag, size = 0x4, scoped, tag = 'scoped memory for tpu_custom_call.1']
    #allocation7 [shape = 'u8[8192]{0}', space=vmem, size = 0x2000, scoped, tag = 'output window, operand 0, single buffered']
    %7 = vsyncpa [#allocation3], 0
    %8 = vsyncpa [#allocation6], 0
    %9 = vsyncpa [#allocation4], 0
    // Predicated region
    $region2: #{tpu_custom_call.1} parent=1 // pred_check
      _
    $region3: #{tpu_custom_call.1} parent=1 // pred_check_branch
      %11 = sbr.rel (0) target = $region5
    $region4: #{tpu_custom_call.1} parent=1 // pred_region
      %13 = vsyncadd [#allocation3], 0
      %s14 = sshll.u32 %s0, 4
      %s15 = int_to_ptr.hbm [resolvable:$true] %s14
      %s16 = sshll.u32 [#allocation2], 4
      %s17 = int_to_ptr.vmem [resolvable:$true] %s16
      %22 = dma.hbm_to_vmem [thread:$0]  %s15, 128, %s17, [#allocation3], 64, 64, 4
    $region5: #{tpu_custom_call.1} parent=1 // pred_fallthru
      _
    // Predicated region
    $region6: #{tpu_custom_call.1} parent=1 // pred_check
      _
    $region7: #{tpu_custom_call.1} parent=1 // pred_check_branch
      %24 = sbr.rel (0) target = $region9
    $region8: #{tpu_custom_call.1} parent=1 // pred_region
      %26 = vsyncadd [#allocation6], 0
      %s28 = sshll.u32 %s1, 4
      %s29 = int_to_ptr.hbm [resolvable:$true] %s28
      %s30 = sshll.u32 [#allocation5], 4
      %s31 = int_to_ptr.vmem [resolvable:$true] %s30
      %33 = dma.hbm_to_vmem [thread:$0]  %s29, 16, %s31, [#allocation6]
    $region9: #{tpu_custom_call.1} parent=1 // pred_fallthru
      _
    // Predicated region
    $region10: #{tpu_custom_call.1} parent=1 // pred_check
      _
    $region11: #{tpu_custom_call.1} parent=1 // pred_check_branch
      %35 = sbr.rel (0) target = $region13
    $region12: #{tpu_custom_call.1} parent=1 // pred_region
      %37 = dma.done [#allocation3], 128
    $region13: #{tpu_custom_call.1} parent=1 // pred_fallthru
      _
    // Predicated region
    $region14: #{tpu_custom_call.1} parent=1 // pred_check
      _
    $region15: #{tpu_custom_call.1} parent=1 // pred_check_branch
      %39 = sbr.rel (0) target = $region17
    $region16: #{tpu_custom_call.1} parent=1 // pred_region
      %41 = dma.done [#allocation6], 16
    $region17: #{tpu_custom_call.1} parent=1 // pred_fallthru
      _
    %v42 = vld [vmem:[#allocation2] sm:$0xf]
    %v43 = vld [vmem:[#allocation2 + $0x4] sm:$0xf]
    %v44 = vunpack.c.l.bf16 %v42
    %v45 = vunpack.c.l.bf16 %v43
    %v46 = vmul.f32 %v44, %v44
    %v47 = vmul.f32 %v45, %v45
    %48 = vadd.xlane.f32.xlu0 %v46
    %v49 = vpop.xlane.xlu0 %48
    %50 = vadd.xlane.f32.xlu0 %v47
    %v51 = vpop.xlane.xlu0 %50
    %v52 = vmul.f32 %v49, 0.03125
    %v53 = vmul.f32 %v51, 0.03125
    %v54 = vadd.f32 %v52, 1e-06
    %v55 = vadd.f32 %v53, 1e-06
    %v56 = vrsqrt.pop %v54
    %v57 = vmul.f32 %v56, %v54
    %v58 = vmul.f32 %v57, %v56
    %v59 = vmul.f32 0.5, %v58
    %v60 = vsub.f32 1.5, %v59
    %v61 = vmul.f32 %v56, %v60
    %vm62 = vweird.f32 %v54
    %vm63 = vweird.f32 %v56
    %vm64 = vmor %vm62, %vm63
    %v65 = vsel %vm64, %v56, %v61
    %v66 = vrsqrt.pop %v55
    %v67 = vmul.f32 %v66, %v55
    %v68 = vmul.f32 %v67, %v66
    %v69 = vmul.f32 0.5, %v68
    %v70 = vsub.f32 1.5, %v69
    %v71 = vmul.f32 %v66, %v70
    %vm72 = vweird.f32 %v55
    %vm73 = vweird.f32 %v66
    %vm74 = vmor %vm72, %vm73
    %v75 = vsel %vm74, %v66, %v71
    %v76 = vmul.f32 %v44, %v65
    %v77 = vmul.f32 %v45, %v75
    %v78 = vld [vmem:[#allocation5] sm:$0x1]
    %v79 = vpack.c.bf16 %v76, %v76
    %v80 = vpack.c.bf16 %v77, %v77
    %v81 = vunpack.c.l.bf16 %v79
    %v82 = vunpack.c.l.bf16 %v80
    %v84 = vperm.slane %v78, 0
    %v86 = vmul.f32 %v84, %v81
    %v87 = vmul.f32 %v84, %v82
    %88 = vst [vmem:[#allocation7] sm:$0xff] %v86
    %89 = vst [vmem:[#allocation7 + $0x8] sm:$0xff] %v87
    // Predicated region
    $region18: #{tpu_custom_call.1} parent=1 // pred_check
      _
    $region19: #{tpu_custom_call.1} parent=1 // pred_check_branch
      %91 = sbr.rel (0) target = $region21
    $region20: #{tpu_custom_call.1} parent=1 // pred_region
      %93 = vsyncadd [#allocation4], 0
      %s94 = sshll.u32 [#allocation7], 4
      %s95 = int_to_ptr.vmem [resolvable:$true] %s94
      %s96 = sshll.u32 %s2, 4
      %s97 = int_to_ptr.hbm [resolvable:$true] %s96
      %102 = dma.vmem_to_hbm [thread:$0]  %s95, 256, %s97, [#allocation4], 128, 128, 8
    $region21: #{tpu_custom_call.1} parent=1 // pred_fallthru
      _
    // Predicated region
    $region22: #{tpu_custom_call.1} parent=1 // pred_check
      _
    $region23: #{tpu_custom_call.1} parent=1 // pred_check_branch
      %104 = sbr.rel (0) target = $region25
    $region24: #{tpu_custom_call.1} parent=1 // pred_region
      %106 = dma.done [#allocation4], 256
    $region25: #{tpu_custom_call.1} parent=1 // pred_fallthru
      _
    %107 = vsyncpa [#allocation3], 1
    %108 = vsyncpa [#allocation6], 1
    %109 = vsyncpa [#allocation4], 1

</llo_original>
